<compile_context>
chip_gen: v5e
topology: v5e:2x2
jax: 0.10.0
libtpu: 0.0.40
codegen_flags: <defaults>
</compile_context>

<pallas_src>
import functools

import jax
import jax.numpy as jnp
import numpy as np
from jax.experimental import pallas as pl
from jax.experimental.pallas import tpu as pltpu


# ---------------------------------------------------------------------------
# Per-generation tuning.
# ---------------------------------------------------------------------------
@functools.lru_cache(maxsize=None)
def _vmem_limit_bytes():
    """Scoped-VMEM budget: ~3/4 of physical, capped at 96 MiB, floor 32 MiB."""
    try:
        cap = int(pltpu.get_tpu_info().vmem_capacity_bytes)
    except Exception:   # interpret mode / unexpected backend: safe default
        return 32 * 1024 * 1024
    return max(32 * 1024 * 1024, min(3 * cap // 4, 96 * 1024 * 1024))


@functools.lru_cache(maxsize=None)
def _default_block_m():
    """M-tile for dense kernels: 128 fills v5e's 4x128 MXU, 256 for v6e/v7x."""
    try:
        kind = jax.devices()[0].device_kind.lower()
    except Exception:
        kind = ""
    return 128 if ("v5e" in kind or "v5 lite" in kind or "v5lite" in kind) else 256


# ---------------------------------------------------------------------------
# Dense (y = x @ w + b) over a flat (M, K) slab, tiled along M.
# Used for the fused QKV projection (batch folded into M).
# ---------------------------------------------------------------------------
def _dense_kernel(x_ref, w_ref, b_ref, o_ref):
    acc = jnp.dot(x_ref[...], w_ref[...], preferred_element_type=jnp.float32)
    o_ref[...] = (acc + b_ref[...]).astype(o_ref.dtype)


def _dense(x, w, b, out_dtype, *, block_m=None):
    M, K = x.shape
    N = w.shape[1]
    bm = min(block_m or _default_block_m(), M)
    # TODO(synk): add an N grid axis (weight tile (K, tn), N outer / M inner) for
    # GPT2-medium/large/XL widths where a monolithic (K, 3E) weight crowds VMEM.
    return pl.pallas_call(
        _dense_kernel,
        grid=(pl.cdiv(M, bm),),
        in_specs=[
            pl.BlockSpec((bm, K), lambda i: (i, 0)),
            # constant block index + single buffer -> one resident copy, no re-DMA
            pl.BlockSpec((K, N), lambda i: (0, 0), pipeline_mode=pl.Buffered(1)),
            pl.BlockSpec((1, N), lambda i: (0, 0), pipeline_mode=pl.Buffered(1)),
        ],
        out_specs=pl.BlockSpec((bm, N), lambda i: (i, 0)),
        out_shape=jax.ShapeDtypeStruct((M, N), out_dtype),
        compiler_params=pltpu.CompilerParams(
            dimension_semantics=("parallel",),
            vmem_limit_bytes=_vmem_limit_bytes(),
        ),
    )(x, w, b)


# ---------------------------------------------------------------------------
# Per-batch attention + KV-cache window update + final fc (fused).
# ---------------------------------------------------------------------------
def _attn_fc_kernel(qkv_ref, kpast_ref, vpast_ref, wfc_ref, bfc_ref,
                    out_ref, kout_ref, vout_ref, *, q_len, past, embed):
    qkv = qkv_ref[0]                                   # (Sq, 3E) bf16
    q = qkv[:, 0:embed]                                # 1/sqrt(E) folded into wq/bq
    k_new = qkv[:, embed:2 * embed]
    v_new = qkv[:, 2 * embed:3 * embed]

    # Window-only cache writeback (aliased buffers; all other rows untouched).
    kout_ref[0] = k_new
    vout_ref[0] = v_new

    # Scores vs. the new keys; causal inside the window (query i -> keys j <= i).
    s_new = jax.lax.dot_general(q, k_new, (((1,), (1,)), ((), ())),
                                preferred_element_type=jnp.float32)      # (Sq, Sq)
    ri = jax.lax.broadcasted_iota(jnp.int32, (q_len, q_len), 0)
    cj = jax.lax.broadcasted_iota(jnp.int32, (q_len, q_len), 1)
    s_new = jnp.where(cj <= ri, s_new, -1e30)

    if past > 0:
        # Past keys are fully visible.  Split matmuls + joint max instead of a
        # sublane-axis concat of (past, new) K/V (no copies, no bf16 repacking).
        s_past = jax.lax.dot_general(q, kpast_ref[0], (((1,), (1,)), ((), ())),
                                     preferred_element_type=jnp.float32)  # (Sq, past)
        m = jnp.maximum(jnp.max(s_past, axis=-1, keepdims=True),
                        jnp.max(s_new, axis=-1, keepdims=True))
        p_past = jnp.exp(s_past - m)
        p_new = jnp.exp(s_new - m)
        denom = (jnp.sum(p_past, axis=-1, keepdims=True)
                 + jnp.sum(p_new, axis=-1, keepdims=True))
        ctx = (jnp.dot(p_past.astype(vpast_ref.dtype), vpast_ref[0],
                       preferred_element_type=jnp.float32)
               + jnp.dot(p_new.astype(v_new.dtype), v_new,
                         preferred_element_type=jnp.float32))
    else:
        m = jnp.max(s_new, axis=-1, keepdims=True)
        p_new = jnp.exp(s_new - m)
        denom = jnp.sum(p_new, axis=-1, keepdims=True)
        ctx = jnp.dot(p_new.astype(v_new.dtype), v_new,
                      preferred_element_type=jnp.float32)

    ctx = ctx * pl.reciprocal(denom, approx=True)       # EUP slot, ~free
    # Fused final fc: out = ctx @ wfc + bfc (f32 MXU accumulation, f32 output).
    out = jnp.dot(ctx.astype(wfc_ref.dtype), wfc_ref[...],
                  preferred_element_type=jnp.float32) + bfc_ref[...]
    out_ref[0] = out.astype(out_ref.dtype)


def _attention_fc(qkv, k_cache, v_cache, wfc_t, bfc, *, q_len, past, embed):
    B = qkv.shape[0]
    win = past // q_len          # block index of the new-KV window in the cache
    kernel = functools.partial(_attn_fc_kernel, q_len=q_len, past=past, embed=embed)

    qkv_spec = pl.BlockSpec((1, q_len, 3 * embed), lambda b: (b, 0, 0))
    wfc_spec = pl.BlockSpec((embed, embed), lambda b: (0, 0), pipeline_mode=pl.Buffered(1))
    bfc_spec = pl.BlockSpec((1, embed), lambda b: (0, 0), pipeline_mode=pl.Buffered(1))
    out_spec = pl.BlockSpec((1, q_len, embed), lambda b: (b, 0, 0))
    cache_out = pl.BlockSpec((1, q_len, embed), lambda b: (b, win, 0))

    if past > 0:
        # TODO(synk): tile over the KV/sequence axis (flash-style online softmax)
        # once (past, E) bf16 blocks no longer fit comfortably in VMEM (long contexts).
        cache_in = pl.BlockSpec((1, past, embed), lambda b: (b, 0, 0))
    else:
        # past == 0: caches are never read -> raw HBM refs, no dummy DMA.
        cache_in = pl.BlockSpec(memory_space=pl.ANY)

    return pl.pallas_call(
        kernel,
        grid=(B,),
        in_specs=[qkv_spec, cache_in, cache_in, wfc_spec, bfc_spec],
        out_specs=[out_spec, cache_out, cache_out],
        out_shape=[
            jax.ShapeDtypeStruct((B, q_len, embed), jnp.float32),
            jax.ShapeDtypeStruct(k_cache.shape, k_cache.dtype),
            jax.ShapeDtypeStruct(v_cache.shape, v_cache.dtype),
        ],
        input_output_aliases={1: 1, 2: 2},     # caches updated in place (window only)
        compiler_params=pltpu.CompilerParams(
            dimension_semantics=("parallel",),  # v7x megacore splits the batch
            vmem_limit_bytes=_vmem_limit_bytes(),
        ),
    )(qkv, k_cache, v_cache, wfc_t, bfc)


# ---------------------------------------------------------------------------
# One-time parameter preparation + full forward.
# ---------------------------------------------------------------------------
def prepare_params(raw_params):
    """Fuse Q/K/V projections into one (E, 3E) weight and fold in the 1/sqrt(E) scale."""
    E = raw_params["wq_t"].shape[0]
    scale = 1.0 / float(np.sqrt(E))
    wq = (raw_params["wq_t"].astype(jnp.float32) * scale).astype(jnp.bfloat16)
    bq = raw_params["bq"].astype(jnp.float32) * scale
    params = dict(raw_params)
    params["w_qkv"] = jnp.concatenate([wq, raw_params["wk_t"], raw_params["wv_t"]], axis=1)
    params["b_qkv"] = jnp.concatenate(
        [bq, raw_params["bk"], raw_params["bv"]], axis=1).astype(jnp.float32)
    return params


def gpt2_kvcache_forward(input_ids, causal_mask, params, k_cache, v_cache):
    """Functional equivalent of GPT2WithKVCache.forward.

    Returns (output, new_k_cache, new_v_cache).  `causal_mask` is assumed to be
    the standard causal mask (query i attends to keys j <= past + i); only its
    trailing dimension (end_step) is consumed -- the mask itself is regenerated
    in-kernel from iota so it never streams from HBM.
    """
    # TODO(synk): fuse this embedding row-gather into the QKV dense via
    # PrefetchScalarGridSpec + pl.Element; kept as an XLA gather for now.
    emb = params["embedding"][input_ids]                # (B, Sq, E) bf16
    B, Sq, E = emb.shape
    S_end = causal_mask.shape[-1]
    past = S_end - Sq
    S_max = k_cache.shape[1]

    assert E % 128 == 0, "embed_size must be a multiple of 128 (lane-dense)"
    assert Sq % 8 == 0, "q_len must be sublane-aligned (prefer multiples of 16 for bf16)"
    assert S_max % Sq == 0 and 0 <= past and past + Sq <= S_max
    # TODO(synk): support unaligned past_kv_len (ragged decode) via masked window stores.
    assert past % Sq == 0

    # 1) Fused QKV projection over the flat (B*Sq, E) slab (batch folded into M).
    qkv = _dense(emb.reshape(B * Sq, E), params["w_qkv"], params["b_qkv"], jnp.bfloat16)
    qkv = qkv.reshape(B, Sq, 3 * E)

    # 2) Attention + window-only cache writeback + final fc, fused per batch element.
    return _attention_fc(qkv, k_cache, v_cache, params["wfc_t"], params["bfc"],
                         q_len=Sq, past=past, embed=E)


# ---------------------------------------------------------------------------
# Params / reference / demo.
# ---------------------------------------------------------------------------
def _init_params(key, vocab_size, embed_size):
    ks = jax.random.split(key, 9)
    s = 1.0 / np.sqrt(embed_size)
    u = lambda k, shape: jax.random.uniform(k, shape, jnp.float32, -s, s)
    return {
        "embedding": jax.random.normal(ks[0], (vocab_size, embed_size)).astype(jnp.bfloat16),
        "wq_t": u(ks[1], (embed_size, embed_size)).astype(jnp.bfloat16),
        "bq": u(ks[2], (1, embed_size)),
        "wk_t": u(ks[3], (embed_size, embed_size)).astype(jnp.bfloat16),
        "bk": u(ks[4], (1, embed_size)),
        "wv_t": u(ks[5], (embed_size, embed_size)).astype(jnp.bfloat16),
        "bv": u(ks[6], (1, embed_size)),
        "wfc_t": u(ks[7], (embed_size, embed_size)).astype(jnp.bfloat16),
        "bfc": u(ks[8], (1, embed_size)),
    }


def _reference(input_ids, causal_mask, params, k_cache, v_cache):
    """Pure-JAX reference mirroring the torch module (bf16 weights/caches, f32 math)."""
    f32 = jnp.float32
    emb = params["embedding"][input_ids].astype(f32)
    q = (emb @ params["wq_t"].astype(f32) + params["bq"]).astype(jnp.bfloat16).astype(f32)
    k_new = (emb @ params["wk_t"].astype(f32) + params["bk"]).astype(jnp.bfloat16)
    v_new = (emb @ params["wv_t"].astype(f32) + params["bv"]).astype(jnp.bfloat16)
    Sq = q.shape[1]
    S_end = causal_mask.shape[-1]
    past = S_end - Sq
    kc = k_cache.at[:, past:S_end, :].set(k_new)
    vc = v_cache.at[:, past:S_end, :].set(v_new)
    K = kc[:, :S_end, :].astype(f32)
    V = vc[:, :S_end, :].astype(f32)
    scale = 1.0 / np.sqrt(q.shape[-1])
    scores = jnp.einsum("bqe,bke->bqk", q, K) * scale + causal_mask[None].astype(f32)
    attn = jax.nn.softmax(scores, axis=-1)
    ctx = jnp.einsum("bqk,bke->bqe", attn, V).astype(jnp.bfloat16).astype(f32)
    out = ctx @ params["wfc_t"].astype(f32) + params["bfc"]
    return out, kc, vc


def _f32(x):
    return np.asarray(jnp.asarray(x, dtype=jnp.float32))


if __name__ == "__main__":
    vocab_size = 128
    embed_size = 128          # lane-dense (multiple of 128)
    batch_size = 2            # even -> splits across v7x's 2 TensorCores
    max_seq_len = 64
    q_len = 16                # 16-aligned: bf16 packs 16 rows per sublane group
    past_kv_len = 16
    end_step = past_kv_len + q_len          # 32

    key = jax.random.PRNGKey(0)
    kp, ki, kk, kv = jax.random.split(key, 4)
    raw_params = _init_params(kp, vocab_size, embed_size)
    params = prepare_params(raw_params)     # one-time: fused QKV weight + folded scale

    input_ids = jax.random.randint(ki, (batch_size, q_len), 0, vocab_size, jnp.int32)

    # Caches "pre-filled" with the previous past_kv_len steps (bf16).
    k_cache = jax.random.normal(kk, (batch_size, max_seq_len, embed_size)).astype(jnp.bfloat16)
    v_cache = jax.random.normal(kv, (batch_size, max_seq_len, embed_size)).astype(jnp.bfloat16)

    # Additive causal mask [q_len, end_step] (standard causal pattern).
    qi = jnp.arange(q_len)[:, None]
    kj = jnp.arange(end_step)[None, :]
    causal_mask = jnp.where(kj <= past_kv_len + qi, 0.0, -1e30).astype(jnp.float32)

    # Compute the reference FIRST: the kernel donates / in-place-updates the caches.
    ref_out, ref_kc, ref_vc = _reference(input_ids, causal_mask, raw_params, k_cache, v_cache)
    ref_out, ref_kc, ref_vc = jax.block_until_ready((ref_out, ref_kc, ref_vc))

    fwd = jax.jit(gpt2_kvcache_forward, donate_argnums=(3, 4))
    out, kc_new, vc_new = fwd(input_ids, causal_mask, params, k_cache, v_cache)
    jax.block_until_ready((out, kc_new, vc_new))

    np.testing.assert_allclose(_f32(out), _f32(ref_out), atol=3e-2, rtol=3e-2)
    np.testing.assert_allclose(_f32(kc_new), _f32(ref_kc), atol=1e-2, rtol=1e-2)
    np.testing.assert_allclose(_f32(vc_new), _f32(ref_vc), atol=1e-2, rtol=1e-2)

    print("KERNEL_OK")
</pallas_src>

<mosaic_0001>
module attributes {stable_mosaic.version = 11 : i64} {
  func.func @_dense_kernel(%arg0: i32, %arg1: memref<32x128xbf16, #tpu.memory_space<vmem>>, %arg2: memref<128x384xbf16, #tpu.memory_space<vmem>>, %arg3: memref<1x384xf32, #tpu.memory_space<vmem>>, %arg4: memref<32x384xbf16, #tpu.memory_space<vmem>>) attributes {dimension_semantics = [#tpu.dimension_semantics<parallel>], iteration_bounds = array<i64: 1>, scalar_prefetch = 0 : i64, scratch_operands = 0 : i64, tpu.core_type = #tpu.core_type<tc>, window_params = [{transform_indices = @transform_0, window_bounds = array<i64: 32, 128>}, {pipeline_mode = #tpu.pipeline_mode<synchronous>, transform_indices = @transform_1, window_bounds = array<i64: 128, 384>}, {pipeline_mode = #tpu.pipeline_mode<synchronous>, transform_indices = @transform_2, window_bounds = array<i64: 1, 384>}, {transform_indices = @transform_3, window_bounds = array<i64: 32, 384>}]} {
    %c0 = arith.constant 0 : index
    %c0_0 = arith.constant 0 : index
    %0 = vector.load %arg1[%c0, %c0_0] : memref<32x128xbf16, #tpu.memory_space<vmem>>, vector<32x128xbf16>
    %c0_1 = arith.constant 0 : index
    %c0_2 = arith.constant 0 : index
    %1 = vector.load %arg2[%c0_1, %c0_2] : memref<128x384xbf16, #tpu.memory_space<vmem>>, vector<128x384xbf16>
    %cst = arith.constant dense<0.000000e+00> : vector<32x384xf32>
    %2 = tpu.matmul %0, %1, %cst {dimension_numbers = #tpu.dot_dimension_numbers<[1], [0], [0], [1], [0, 0, 1, 1], [], []>} : vector<32x128xbf16>, vector<128x384xbf16>, vector<32x384xf32> -> vector<32x384xf32>
    %c0_3 = arith.constant 0 : index
    %c0_4 = arith.constant 0 : index
    %3 = vector.load %arg3[%c0_3, %c0_4] : memref<1x384xf32, #tpu.memory_space<vmem>>, vector<1x384xf32>
    %4 = vector.broadcast %3 : vector<1x384xf32> to vector<32x384xf32>
    %5 = arith.addf %2, %4 : vector<32x384xf32>
    %6 = arith.truncf %5 : vector<32x384xf32> to vector<32x384xbf16>
    %c0_5 = arith.constant 0 : index
    %c0_6 = arith.constant 0 : index
    %7 = vector.load %arg4[%c0_5, %c0_6] : memref<32x384xbf16, #tpu.memory_space<vmem>>, vector<32x384xbf16>
    tpu.vector_store %arg4[%c0_5, %c0_6], %6 {strides = array<i32>} : memref<32x384xbf16, #tpu.memory_space<vmem>>, vector<32x384xbf16>,
    return
  }
  func.func @transform_0(%arg0: i32) -> (i32, i32) {
    %c0_i32 = arith.constant 0 : i32
    %c0_i32_0 = arith.constant 0 : i32
    return %arg0, %c0_i32 : i32, i32
  }
  func.func @transform_1(%arg0: i32) -> (i32, i32) {
    %c0_i32 = arith.constant 0 : i32
    %c0_i32_0 = arith.constant 0 : i32
    %c0_i32_1 = arith.constant 0 : i32
    return %c0_i32, %c0_i32_0 : i32, i32
  }
  func.func @transform_2(%arg0: i32) -> (i32, i32) {
    %c0_i32 = arith.constant 0 : i32
    %c0_i32_0 = arith.constant 0 : i32
    %c0_i32_1 = arith.constant 0 : i32
    return %c0_i32, %c0_i32_0 : i32, i32
  }
  func.func @transform_3(%arg0: i32) -> (i32, i32) {
    %c0_i32 = arith.constant 0 : i32
    %c0_i32_0 = arith.constant 0 : i32
    return %arg0, %c0_i32 : i32, i32
  }
}

module attributes {stable_mosaic.version = 11 : i64} {
  func.func @_attn_fc_kernel(%arg0: i32, %arg1: memref<1x16x384xbf16, #tpu.memory_space<vmem>>, %arg2: memref<1x16x128xbf16, #tpu.memory_space<vmem>>, %arg3: memref<1x16x128xbf16, #tpu.memory_space<vmem>>, %arg4: memref<128x128xbf16, #tpu.memory_space<vmem>>, %arg5: memref<1x128xf32, #tpu.memory_space<vmem>>, %arg6: memref<1x16x128xf32, #tpu.memory_space<vmem>>, %arg7: memref<1x16x128xbf16, #tpu.memory_space<vmem>>, %arg8: memref<1x16x128xbf16, #tpu.memory_space<vmem>>) attributes {dimension_semantics = [#tpu.dimension_semantics<parallel>], iteration_bounds = array<i64: 2>, scalar_prefetch = 0 : i64, scratch_operands = 0 : i64, tpu.core_type = #tpu.core_type<tc>, window_params = [{transform_indices = @transform_0, window_bounds = array<i64: 1, 16, 384>}, {transform_indices = @transform_1, window_bounds = array<i64: 1, 16, 128>}, {transform_indices = @transform_2, window_bounds = array<i64: 1, 16, 128>}, {pipeline_mode = #tpu.pipeline_mode<synchronous>, transform_indices = @transform_3, window_bounds = array<i64: 128, 128>}, {pipeline_mode = #tpu.pipeline_mode<synchronous>, transform_indices = @transform_4, window_bounds = array<i64: 1, 128>}, {transform_indices = @transform_5, window_bounds = array<i64: 1, 16, 128>}, {transform_indices = @transform_6, window_bounds = array<i64: 1, 16, 128>}, {transform_indices = @transform_7, window_bounds = array<i64: 1, 16, 128>}]} {
    %c0 = arith.constant 0 : index
    %c0_0 = arith.constant 0 : index
    %c0_1 = arith.constant 0 : index
    %0 = vector.load %arg1[%c0, %c0_0, %c0_1] : memref<1x16x384xbf16, #tpu.memory_space<vmem>>, vector<1x16x384xbf16>
    %1 = vector.shape_cast %0 : vector<1x16x384xbf16> to vector<16x384xbf16>
    %2 = vector.extract_strided_slice %1 {offsets = [0, 0], sizes = [16, 128], strides = [1, 1]} : vector<16x384xbf16> to vector<16x128xbf16>
    %3 = vector.extract_strided_slice %1 {offsets = [0, 128], sizes = [16, 128], strides = [1, 1]} : vector<16x384xbf16> to vector<16x128xbf16>
    %4 = vector.extract_strided_slice %1 {offsets = [0, 256], sizes = [16, 128], strides = [1, 1]} : vector<16x384xbf16> to vector<16x128xbf16>
    %c0_2 = arith.constant 0 : index
    %c0_3 = arith.constant 0 : index
    %c0_4 = arith.constant 0 : index
    %5 = vector.load %arg7[%c0_2, %c0_3, %c0_4] : memref<1x16x128xbf16, #tpu.memory_space<vmem>>, vector<1x16x128xbf16>
    %6 = vector.shape_cast %5 : vector<1x16x128xbf16> to vector<16x128xbf16>
    %7 = vector.shape_cast %3 : vector<16x128xbf16> to vector<1x16x128xbf16>
    tpu.vector_store %arg7[%c0_2, %c0_3, %c0_4], %7 {strides = array<i32>} : memref<1x16x128xbf16, #tpu.memory_space<vmem>>, vector<1x16x128xbf16>,
    %c0_5 = arith.constant 0 : index
    %c0_6 = arith.constant 0 : index
    %c0_7 = arith.constant 0 : index
    %8 = vector.load %arg8[%c0_5, %c0_6, %c0_7] : memref<1x16x128xbf16, #tpu.memory_space<vmem>>, vector<1x16x128xbf16>
    %9 = vector.shape_cast %8 : vector<1x16x128xbf16> to vector<16x128xbf16>
    %10 = vector.shape_cast %4 : vector<16x128xbf16> to vector<1x16x128xbf16>
    tpu.vector_store %arg8[%c0_5, %c0_6, %c0_7], %10 {strides = array<i32>} : memref<1x16x128xbf16, #tpu.memory_space<vmem>>, vector<1x16x128xbf16>,
    %cst = arith.constant dense<0.000000e+00> : vector<16x16xf32>
    %11 = tpu.matmul %2, %3, %cst {dimension_numbers = #tpu.dot_dimension_numbers<[1], [1], [0], [0], [0, 0, 1, 0], [], []>} : vector<16x128xbf16>, vector<16x128xbf16>, vector<16x16xf32> -> vector<16x16xf32>
    %12 = tpu.iota {dimensions = array<i32: 0>} : vector<16x16xi32>
    %13 = tpu.iota {dimensions = array<i32: 1>} : vector<16x16xi32>
    %14 = arith.cmpi sle, %13, %12 : vector<16x16xi32>
    %cst_8 = arith.constant -1.000000e+30 : f32
    %15 = vector.broadcast %cst_8 : f32 to vector<16x16xf32>
    %16 = arith.select %14, %11, %15 : vector<16x16xi1>, vector<16x16xf32>
    %c0_9 = arith.constant 0 : index
    %c0_10 = arith.constant 0 : index
    %c0_11 = arith.constant 0 : index
    %17 = vector.load %arg2[%c0_9, %c0_10, %c0_11] : memref<1x16x128xbf16, #tpu.memory_space<vmem>>, vector<1x16x128xbf16>
    %18 = vector.shape_cast %17 : vector<1x16x128xbf16> to vector<16x128xbf16>
    %cst_12 = arith.constant dense<0.000000e+00> : vector<16x16xf32>
    %19 = tpu.matmul %2, %18, %cst_12 {dimension_numbers = #tpu.dot_dimension_numbers<[1], [1], [0], [0], [0, 0, 1, 0], [], []>} : vector<16x128xbf16>, vector<16x128xbf16>, vector<16x16xf32> -> vector<16x16xf32>
    %cst_13 = arith.constant dense<0xFF800000> : vector<16xf32>
    %20 = vector.multi_reduction <maximumf>, %19, %cst_13 [1] : vector<16x16xf32> to vector<16xf32>
    %21 = vector.shape_cast %20 : vector<16xf32> to vector<16x1xf32>
    %cst_14 = arith.constant dense<0xFF800000> : vector<16xf32>
    %22 = vector.multi_reduction <maximumf>, %16, %cst_14 [1] : vector<16x16xf32> to vector<16xf32>
    %23 = vector.shape_cast %22 : vector<16xf32> to vector<16x1xf32>
    %24 = arith.maximumf %21, %23 : vector<16x1xf32>
    %25 = vector.broadcast %24 : vector<16x1xf32> to vector<16x16xf32>
    %26 = arith.subf %19, %25 : vector<16x16xf32>
    %27 = math.exp %26 : vector<16x16xf32>
    %28 = vector.broadcast %24 : vector<16x1xf32> to vector<16x16xf32>
    %29 = arith.subf %16, %28 : vector<16x16xf32>
    %30 = math.exp %29 : vector<16x16xf32>
    %cst_15 = arith.constant dense<0.000000e+00> : vector<16xf32>
    %31 = vector.multi_reduction <add>, %27, %cst_15 [1] : vector<16x16xf32> to vector<16xf32>
    %32 = vector.shape_cast %31 : vector<16xf32> to vector<16x1xf32>
    %cst_16 = arith.constant dense<0.000000e+00> : vector<16xf32>
    %33 = vector.multi_reduction <add>, %30, %cst_16 [1] : vector<16x16xf32> to vector<16xf32>
    %34 = vector.shape_cast %33 : vector<16xf32> to vector<16x1xf32>
    %35 = arith.addf %32, %34 : vector<16x1xf32>
    %36 = arith.truncf %27 : vector<16x16xf32> to vector<16x16xbf16>
    %c0_17 = arith.constant 0 : index
    %c0_18 = arith.constant 0 : index
    %c0_19 = arith.constant 0 : index
    %37 = vector.load %arg3[%c0_17, %c0_18, %c0_19] : memref<1x16x128xbf16, #tpu.memory_space<vmem>>, vector<1x16x128xbf16>
    %38 = vector.shape_cast %37 : vector<1x16x128xbf16> to vector<16x128xbf16>
    %cst_20 = arith.constant dense<0.000000e+00> : vector<16x128xf32>
    %39 = tpu.matmul %36, %38, %cst_20 {dimension_numbers = #tpu.dot_dimension_numbers<[1], [0], [0], [1], [0, 0, 1, 1], [], []>} : vector<16x16xbf16>, vector<16x128xbf16>, vector<16x128xf32> -> vector<16x128xf32>
    %40 = arith.truncf %30 : vector<16x16xf32> to vector<16x16xbf16>
    %cst_21 = arith.constant dense<0.000000e+00> : vector<16x128xf32>
    %41 = tpu.matmul %40, %4, %cst_21 {dimension_numbers = #tpu.dot_dimension_numbers<[1], [0], [0], [1], [0, 0, 1, 1], [], []>} : vector<16x16xbf16>, vector<16x128xbf16>, vector<16x128xf32> -> vector<16x128xf32>
    %42 = arith.addf %39, %41 : vector<16x128xf32>
    %43 = tpu.reciprocal %35 {approx = true} : vector<16x1xf32> -> vector<16x1xf32>
    %44 = vector.broadcast %43 : vector<16x1xf32> to vector<16x128xf32>
    %45 = arith.mulf %42, %44 : vector<16x128xf32>
    %46 = arith.truncf %45 : vector<16x128xf32> to vector<16x128xbf16>
    %c0_22 = arith.constant 0 : index
    %c0_23 = arith.constant 0 : index
    %47 = vector.load %arg4[%c0_22, %c0_23] : memref<128x128xbf16, #tpu.memory_space<vmem>>, vector<128x128xbf16>
    %cst_24 = arith.constant dense<0.000000e+00> : vector<16x128xf32>
    %48 = tpu.matmul %46, %47, %cst_24 {dimension_numbers = #tpu.dot_dimension_numbers<[1], [0], [0], [1], [0, 0, 1, 1], [], []>} : vector<16x128xbf16>, vector<128x128xbf16>, vector<16x128xf32> -> vector<16x128xf32>
    %c0_25 = arith.constant 0 : index
    %c0_26 = arith.constant 0 : index
    %49 = vector.load %arg5[%c0_25, %c0_26] : memref<1x128xf32, #tpu.memory_space<vmem>>, vector<1x128xf32>
    %50 = vector.broadcast %49 : vector<1x128xf32> to vector<16x128xf32>
    %51 = arith.addf %48, %50 : vector<16x128xf32>
    %c0_27 = arith.constant 0 : index
    %c0_28 = arith.constant 0 : index
    %c0_29 = arith.constant 0 : index
    %52 = vector.load %arg6[%c0_27, %c0_28, %c0_29] : memref<1x16x128xf32, #tpu.memory_space<vmem>>, vector<1x16x128xf32>
    %53 = vector.shape_cast %52 : vector<1x16x128xf32> to vector<16x128xf32>
    %54 = vector.shape_cast %51 : vector<16x128xf32> to vector<1x16x128xf32>
    tpu.vector_store %arg6[%c0_27, %c0_28, %c0_29], %54 {strides = array<i32>} : memref<1x16x128xf32, #tpu.memory_space<vmem>>, vector<1x16x128xf32>,
    return
  }
  func.func @transform_0(%arg0: i32) -> (i32, i32, i32) {
    %c0_i32 = arith.constant 0 : i32
    %c0_i32_0 = arith.constant 0 : i32
    %c0_i32_1 = arith.constant 0 : i32
    return %arg0, %c0_i32, %c0_i32_0 : i32, i32, i32
  }
  func.func @transform_1(%arg0: i32) -> (i32, i32, i32) {
    %c0_i32 = arith.constant 0 : i32
    %c0_i32_0 = arith.constant 0 : i32
    %c0_i32_1 = arith.constant 0 : i32
    return %arg0, %c0_i32, %c0_i32_0 : i32, i32, i32
  }
  func.func @transform_2(%arg0: i32) -> (i32, i32, i32) {
    %c0_i32 = arith.constant 0 : i32
    %c0_i32_0 = arith.constant 0 : i32
    %c0_i32_1 = arith.constant 0 : i32
    return %arg0, %c0_i32, %c0_i32_0 : i32, i32, i32
  }
  func.func @transform_3(%arg0: i32) -> (i32, i32) {
    %c0_i32 = arith.constant 0 : i32
    %c0_i32_0 = arith.constant 0 : i32
    %c0_i32_1 = arith.constant 0 : i32
    return %c0_i32, %c0_i32_0 : i32, i32
  }
  func.func @transform_4(%arg0: i32) -> (i32, i32) {
    %c0_i32 = arith.constant 0 : i32
    %c0_i32_0 = arith.constant 0 : i32
    %c0_i32_1 = arith.constant 0 : i32
    return %c0_i32, %c0_i32_0 : i32, i32
  }
  func.func @transform_5(%arg0: i32) -> (i32, i32, i32) {
    %c0_i32 = arith.constant 0 : i32
    %c0_i32_0 = arith.constant 0 : i32
    %c0_i32_1 = arith.constant 0 : i32
    return %arg0, %c0_i32, %c0_i32_0 : i32, i32, i32
  }
  func.func @transform_6(%arg0: i32) -> (i32, i32, i32) {
    %c1_i32 = arith.constant 1 : i32
    %c0_i32 = arith.constant 0 : i32
    %c0_i32_0 = arith.constant 0 : i32
    return %arg0, %c1_i32, %c0_i32 : i32, i32, i32
  }
  func.func @transform_7(%arg0: i32) -> (i32, i32, i32) {
    %c1_i32 = arith.constant 1 : i32
    %c0_i32 = arith.constant 0 : i32
    %c0_i32_0 = arith.constant 0 : i32
    return %arg0, %c1_i32, %c0_i32 : i32, i32, i32
  }
}

</mosaic_0001>

<llo_original>
// kernel: gpt2_kvcache_forward.2
$region0: #{gpt2_kvcache_forward.2}
  #allocation0 [shape = 'u32[]', space=smem, size = 0x4, offset = 0x4, fixed_abs, tag = 'smem constant byte address 0x4 - core index']
  #allocation1 [shape = 'u32[72,128]{1,0:T(1,128)}', space=vmem, size = 0x9000, scoped, tag = 'internal scratch']
  %s0 = inlined_call_operand.vmem [shape: bf16[32,128], index: 0, kind: input, shape index: {}]
  %s1 = inlined_call_operand.hbm [shape: bf16[128,384], index: 1, kind: input, shape index: {}]
  %s2 = inlined_call_operand.vmem [shape: f32[1,384], index: 2, kind: input, shape index: {}]
  %s3 = inlined_call_operand.vmem [shape: bf16[32,384], index: 3, kind: output, shape index: {}]
  %s4 = sld [smem:[#allocation0]]
  $region26: #{gpt2_kvcache_forward.2} parent=0
    _
  %s6 = ssub.s32 1, %s4
  %s7 = scalar_select 0, %s6, %s4
  $region1: #{gpt2_kvcache_forward.2} parent=0
    #allocation2 [shape = 'u8[98304]{0}', space=vmem, size = 0x18000, scoped, tag = 'input window, operand 1, single buffered']
    #allocation3 [shape = 's32[1]{0}', space=sflag, size = 0x4, scoped, tag = 'scoped memory for gpt2_kvcache_forward.2']
    %8 = vsyncpa [#allocation3], 0
    // Predicated region
    $region2: #{gpt2_kvcache_forward.2} parent=1 // pred_check
      _
    $region3: #{gpt2_kvcache_forward.2} parent=1 // pred_check_branch
      %10 = sbr.rel (0) target = $region5
    $region4: #{gpt2_kvcache_forward.2} parent=1 // pred_region
      _
    $region5: #{gpt2_kvcache_forward.2} parent=1 // pred_fallthru
      _
    // Predicated region
    $region6: #{gpt2_kvcache_forward.2} parent=1 // pred_check
      _
    $region7: #{gpt2_kvcache_forward.2} parent=1 // pred_check_branch
      %12 = sbr.rel (0) target = $region9
    $region8: #{gpt2_kvcache_forward.2} parent=1 // pred_region
      %14 = vsyncadd [#allocation3], 0
      %s15 = sshll.u32 %s1, 4
      %s16 = int_to_ptr.hbm [resolvable:$true] %s15
      %s17 = sshll.u32 [#allocation2], 4
      %s18 = int_to_ptr.vmem [resolvable:$true] %s17
      %23 = dma.hbm_to_vmem [thread:$0]  %s16, 3072, %s18, [#allocation3], 192, 192, 12
    $region9: #{gpt2_kvcache_forward.2} parent=1 // pred_fallthru
      _
    // Predicated region
    $region10: #{gpt2_kvcache_forward.2} parent=1 // pred_check
      _
    $region11: #{gpt2_kvcache_forward.2} parent=1 // pred_check_branch
      %25 = sbr.rel (0) target = $region13
    $region12: #{gpt2_kvcache_forward.2} parent=1 // pred_region
      _
    $region13: #{gpt2_kvcache_forward.2} parent=1 // pred_fallthru
      _
    // Predicated region
    $region14: #{gpt2_kvcache_forward.2} parent=1 // pred_check
      _
    $region15: #{gpt2_kvcache_forward.2} parent=1 // pred_check_branch
      %27 = sbr.rel (0) target = $region17
    $region16: #{gpt2_kvcache_forward.2} parent=1 // pred_region
      %29 = dma.done [#allocation3], 3072
    $region17: #{gpt2_kvcache_forward.2} parent=1 // pred_fallthru
      _
    %v30 = vld [vmem:[%s0] sm:$0xf]
    %v31 = vld [vmem:[%s0 + $0x4] sm:$0xf]
    %v32 = vld [vmem:[%s0 + $0x8] sm:$0xf]
    %v33 = vld [vmem:[%s0 + $0xc] sm:$0xf]
    %v34 = vld [vmem:[#allocation2] sm:$0xff]
    %v35 = vld [vmem:[#allocation2 + $0x8] sm:$0xf]
    %v36 = vld [vmem:[#allocation2 + $0xc] sm:$0xff]
    %v37 = vld [vmem:[#allocation2 + $0x14] sm:$0xf]
    %v38 = vld [vmem:[#allocation2 + $0x18] sm:$0xff]
    %v39 = vld [vmem:[#allocation2 + $0x20] sm:$0xf]
    %v40 = vld [vmem:[#allocation2 + $0x24] sm:$0xff]
    %v41 = vld [vmem:[#allocation2 + $0x2c] sm:$0xf]
    %v42 = vld [vmem:[#allocation2 + $0x30] sm:$0xff]
    %v43 = vld [vmem:[#allocation2 + $0x38] sm:$0xf]
    %v44 = vld [vmem:[#allocation2 + $0x3c] sm:$0xff]
    %v45 = vld [vmem:[#allocation2 + $0x44] sm:$0xf]
    %v46 = vld [vmem:[#allocation2 + $0x48] sm:$0xff]
    %v47 = vld [vmem:[#allocation2 + $0x50] sm:$0xf]
    %v48 = vld [vmem:[#allocation2 + $0x54] sm:$0xff]
    %v49 = vld [vmem:[#allocation2 + $0x5c] sm:$0xf]
    %v50 = vld [vmem:[#allocation2 + $0x60] sm:$0xff]
    %v51 = vld [vmem:[#allocation2 + $0x68] sm:$0xf]
    %v52 = vld [vmem:[#allocation2 + $0x6c] sm:$0xff]
    %v53 = vld [vmem:[#allocation2 + $0x74] sm:$0xf]
    %v54 = vld [vmem:[#allocation2 + $0x78] sm:$0xff]
    %v55 = vld [vmem:[#allocation2 + $0x80] sm:$0xf]
    %v56 = vld [vmem:[#allocation2 + $0x84] sm:$0xff]
    %v57 = vld [vmem:[#allocation2 + $0x8c] sm:$0xf]
    %v58 = vld [vmem:[#allocation2 + $0x90] sm:$0xff]
    %v59 = vld [vmem:[#allocation2 + $0x98] sm:$0xf]
    %v60 = vld [vmem:[#allocation2 + $0x9c] sm:$0xff]
    %v61 = vld [vmem:[#allocation2 + $0xa4] sm:$0xf]
    %v62 = vld [vmem:[#allocation2 + $0xa8] sm:$0xff]
    %v63 = vld [vmem:[#allocation2 + $0xb0] sm:$0xf]
    %v64 = vld [vmem:[#allocation2 + $0xb4] sm:$0xff]
    %v65 = vld [vmem:[#allocation2 + $0xbc] sm:$0xf]
    %v66 = vld [vmem:[%s2] sm:$0x7]
    %v68 = vperm.slane %v66, 0
    %v69 = vperm.slane %v66, 1
    %v70 = vperm.slane %v66, 2
    %v78 = vunpack.c.l.b16 %v30
    %v79 = vunpack.c.l.b16 %v31
    %v80 = vunpack.c.l.b16 %v32
    %v81 = vunpack.c.l.b16 %v33
    %v82 = vpack.c.b16 %v79, %v78
    %v83 = vpack.c.b16 %v81, %v80
    %v118 = vunpack.c.l.b16 %v34
    %v119 = vunpack.c.h.b16 %v34
    %v120 = vunpack.c.l.b16 %v35
    %v121 = vunpack.c.l.b16 %v36
    %v122 = vunpack.c.h.b16 %v36
    %v123 = vunpack.c.l.b16 %v37
    %v124 = vunpack.c.l.b16 %v38
    %v125 = vunpack.c.h.b16 %v38
    %v126 = vunpack.c.l.b16 %v39
    %v127 = vunpack.c.l.b16 %v40
    %v128 = vunpack.c.h.b16 %v40
    %v129 = vunpack.c.l.b16 %v41
    %v130 = vunpack.c.l.b16 %v42
    %v131 = vunpack.c.h.b16 %v42
    %v132 = vunpack.c.l.b16 %v43
    %v133 = vunpack.c.l.b16 %v44
    %v134 = vunpack.c.h.b16 %v44
    %v135 = vunpack.c.l.b16 %v45
    %v136 = vunpack.c.l.b16 %v46
    %v137 = vunpack.c.h.b16 %v46
    %v138 = vunpack.c.l.b16 %v47
    %v139 = vunpack.c.l.b16 %v48
    %v140 = vunpack.c.h.b16 %v48
    %v141 = vunpack.c.l.b16 %v49
    %v142 = vunpack.c.l.b16 %v50
    %v143 = vunpack.c.h.b16 %v50
    %v144 = vunpack.c.l.b16 %v51
    %v145 = vunpack.c.l.b16 %v52
    %v146 = vunpack.c.h.b16 %v52
    %v147 = vunpack.c.l.b16 %v53
    %v148 = vunpack.c.l.b16 %v54
    %v149 = vunpack.c.h.b16 %v54
    %v150 = vunpack.c.l.b16 %v55
    %v151 = vunpack.c.l.b16 %v56
    %v152 = vunpack.c.h.b16 %v56
    %v153 = vunpack.c.l.b16 %v57
    %v154 = vunpack.c.l.b16 %v58
    %v155 = vunpack.c.h.b16 %v58
    %v156 = vunpack.c.l.b16 %v59
    %v157 = vunpack.c.l.b16 %v60
    %v158 = vunpack.c.h.b16 %v60
    %v159 = vunpack.c.l.b16 %v61
    %v160 = vunpack.c.l.b16 %v62
    %v161 = vunpack.c.h.b16 %v62
    %v162 = vunpack.c.l.b16 %v63
    %v163 = vunpack.c.l.b16 %v64
    %v164 = vunpack.c.h.b16 %v64
    %v165 = vunpack.c.l.b16 %v65
    %v166 = vpack.c.b16 %v121, %v118
    %v167 = vpack.c.b16 %v122, %v119
    %v168 = vpack.c.b16 %v123, %v120
    %v169 = vpack.c.b16 %v127, %v124
    %v170 = vpack.c.b16 %v128, %v125
    %v171 = vpack.c.b16 %v129, %v126
    %v172 = vpack.c.b16 %v133, %v130
    %v173 = vpack.c.b16 %v134, %v131
    %v174 = vpack.c.b16 %v135, %v132
    %v175 = vpack.c.b16 %v139, %v136
    %v176 = vpack.c.b16 %v140, %v137
    %v177 = vpack.c.b16 %v141, %v138
    %v178 = vpack.c.b16 %v145, %v142
    %v179 = vpack.c.b16 %v146, %v143
    %v180 = vpack.c.b16 %v147, %v144
    %v181 = vpack.c.b16 %v151, %v148
    %v182 = vpack.c.b16 %v152, %v149
    %v183 = vpack.c.b16 %v153, %v150
    %v184 = vpack.c.b16 %v157, %v154
    %v185 = vpack.c.b16 %v158, %v155
    %v186 = vpack.c.b16 %v159, %v156
    %v187 = vpack.c.b16 %v163, %v160
    %v188 = vpack.c.b16 %v164, %v161
    %v189 = vpack.c.b16 %v165, %v162
    %214 = vmatpush.bf16.msra.mxu0 %v187
    %215 = vmatpush.bf16.msra.mxu0 %v184
    %216 = vmatpush.bf16.msra.mxu0 %v181
    %217 = vmatpush.bf16.msra.mxu0 %v178
    %218 = vmatpush.bf16.msra.mxu0 %v175
    %219 = vmatpush.bf16.msra.mxu0 %v172
    %220 = vmatpush.bf16.msra.mxu0 %v169
    %221 = vmatpush.bf16.msra.mxu0 %v166
    %222 = vmatmul.bf16.gmra.mxu0 %v82
    %v223 = vpop.f32.mrf.mxu0
    %v224 = vadd.f32 %v68, %v223
    %v225 = vpop.f32.mrf.mxu0
    %v226 = vadd.f32 %v68, %v225
    %227 = vmatmul.bf16.gmra.mxu0 %v83
    %v228 = vpop.f32.mrf.mxu0
    %v229 = vadd.f32 %v68, %v228
    %v230 = vpop.f32.mrf.mxu0
    %v231 = vadd.f32 %v68, %v230
    %232 = vdwg.mxu0
    %233 = vmatpush.bf16.msra.mxu0 %v188
    %234 = vmatpush.bf16.msra.mxu0 %v185
    %235 = vmatpush.bf16.msra.mxu0 %v182
    %236 = vmatpush.bf16.msra.mxu0 %v179
    %237 = vmatpush.bf16.msra.mxu0 %v176
    %238 = vmatpush.bf16.msra.mxu0 %v173
    %239 = vmatpush.bf16.msra.mxu0 %v170
    %240 = vmatpush.bf16.msra.mxu0 %v167
    %241 = vmatmul.bf16.gmra.mxu0 %v82
    %v242 = vpop.f32.mrf.mxu0
    %v243 = vadd.f32 %v69, %v242
    %v244 = vpop.f32.mrf.mxu0
    %v245 = vadd.f32 %v69, %v244
    %246 = vmatmul.bf16.gmra.mxu0 %v83
    %v247 = vpop.f32.mrf.mxu0
    %v248 = vadd.f32 %v69, %v247
    %v249 = vpop.f32.mrf.mxu0
    %v250 = vadd.f32 %v69, %v249
    %251 = vdwg.mxu0
    %252 = vmatpush.bf16.msra.mxu0 %v189
    %253 = vmatpush.bf16.msra.mxu0 %v186
    %254 = vmatpush.bf16.msra.mxu0 %v183
    %255 = vmatpush.bf16.msra.mxu0 %v180
    %256 = vmatpush.bf16.msra.mxu0 %v177
    %257 = vmatpush.bf16.msra.mxu0 %v174
    %258 = vmatpush.bf16.msra.mxu0 %v171
    %259 = vmatpush.bf16.msra.mxu0 %v168
    %260 = vmatmul.bf16.gmra.mxu0 %v82
    %v261 = vpop.f32.mrf.mxu0
    %v262 = vadd.f32 %v70, %v261
    %v263 = vpop.f32.mrf.mxu0
    %v264 = vadd.f32 %v70, %v263
    %265 = vmatmul.bf16.gmra.mxu0 %v83
    %v266 = vpop.f32.mrf.mxu0
    %v267 = vadd.f32 %v70, %v266
    %v268 = vpop.f32.mrf.mxu0
    %v269 = vadd.f32 %v70, %v268
    %270 = vdwg.mxu0
    %v271 = vpack.c.bf16 %v243, %v224
    %v272 = vpack.c.bf16 %v262, %v262
    %v273 = vpack.c.bf16 %v245, %v226
    %v274 = vpack.c.bf16 %v264, %v264
    %v275 = vpack.c.bf16 %v248, %v229
    %v276 = vpack.c.bf16 %v267, %v267
    %v277 = vpack.c.bf16 %v250, %v231
    %v278 = vpack.c.bf16 %v269, %v269
    %279 = vst [vmem:[%s3] sm:$0xff] %v271
    %280 = vst [vmem:[%s3 + $0x8] sm:$0xf] %v272
    %281 = vst [vmem:[%s3 + $0xc] sm:$0xff] %v273
    %282 = vst [vmem:[%s3 + $0x14] sm:$0xf] %v274
    %283 = vst [vmem:[%s3 + $0x18] sm:$0xff] %v275
    %284 = vst [vmem:[%s3 + $0x20] sm:$0xf] %v276
    %285 = vst [vmem:[%s3 + $0x24] sm:$0xff] %v277
    %286 = vst [vmem:[%s3 + $0x2c] sm:$0xf] %v278
    // Predicated region
    $region18: #{gpt2_kvcache_forward.2} parent=1 // pred_check
      _
    $region19: #{gpt2_kvcache_forward.2} parent=1 // pred_check_branch
      %288 = sbr.rel (0) target = $region21
    $region20: #{gpt2_kvcache_forward.2} parent=1 // pred_region
      _
    $region21: #{gpt2_kvcache_forward.2} parent=1 // pred_fallthru
      _
    // Predicated region
    $region22: #{gpt2_kvcache_forward.2} parent=1 // pred_check
      _
    $region23: #{gpt2_kvcache_forward.2} parent=1 // pred_check_branch
      %290 = sbr.rel (0) target = $region25
    $region24: #{gpt2_kvcache_forward.2} parent=1 // pred_region
      _
    $region25: #{gpt2_kvcache_forward.2} parent=1 // pred_fallthru
      _
    %291 = vsyncpa [#allocation3], 1

// kernel: gpt2_kvcache_forward.3
$region0: #{gpt2_kvcache_forward.3}
  #allocation0 [shape = 'u32[]', space=smem, size = 0x4, offset = 0x4, fixed_abs, tag = 'smem constant byte address 0x4 - core index']
  #allocation1 [shape = 'u32[72,128]{1,0:T(1,128)}', space=vmem, size = 0x9000, scoped, tag = 'internal scratch']
  %s0 = inlined_call_operand.vmem [shape: bf16[2,16,384], index: 0, kind: input, shape index: {}]
  %s1 = inlined_call_operand.hbm [shape: bf16[2,64,128], index: 1, kind: input, shape index: {}, may-alias: {1,6}]
  %s2 = inlined_call_operand.hbm [shape: bf16[2,64,128], index: 2, kind: input, shape index: {}, may-alias: {2,7}]
  %s3 = inlined_call_operand.vmem [shape: bf16[128,128], index: 3, kind: input, shape index: {}]
  %s4 = inlined_call_operand.vmem [shape: f32[1,128], index: 4, kind: input, shape index: {}]
  %s5 = inlined_call_operand.hbm [shape: f32[2,16,128], index: 5, kind: output, shape index: {0}]
  %s6 = inlined_call_operand.hbm [shape: bf16[2,64,128], index: 6, kind: output, shape index: {1}, may-alias: {1,6}]
  %s7 = inlined_call_operand.hbm [shape: bf16[2,64,128], index: 7, kind: output, shape index: {2}, may-alias: {2,7}]
  %8 = xla_tuple %s5, %s6, %s7
  %s9 = sld [smem:[#allocation0]]
  $region77: #{gpt2_kvcache_forward.3} parent=0
    _
  %s11 = ssub.s32 1, %s9
  %s12 = scalar_select 0, %s11, %s9
  $region1: #{gpt2_kvcache_forward.3} parent=0
    #allocation2 [shape = 'u8[8192]{0}', space=vmem, size = 0x2000, scoped, tag = 'input window, operand 1']
    #allocation3 [shape = 's32[2]{0}', space=sflag, size = 0x8, scoped, tag = 'scoped memory for gpt2_kvcache_forward.3']
    #allocation4 [shape = 's32[2]{0}', space=sflag, size = 0x8, scoped, tag = 'scoped memory for gpt2_kvcache_forward.3']
    #allocation5 [shape = 'u8[8192]{0}', space=vmem, size = 0x2000, scoped, tag = 'input window, operand 2']
    #allocation6 [shape = 's32[2]{0}', space=sflag, size = 0x8, scoped, tag = 'scoped memory for gpt2_kvcache_forward.3']
    #allocation7 [shape = 'u8[16384]{0}', space=vmem, size = 0x4000, scoped, tag = 'output window, operand 0']
    #allocation8 [shape = 'u8[8192]{0}', space=vmem, size = 0x2000, scoped, tag = 'output window, operand 1']
    #allocation9 [shape = 's32[2]{0}', space=sflag, size = 0x8, scoped, tag = 'scoped memory for gpt2_kvcache_forward.3']
    #allocation10 [shape = 'u8[8192]{0}', space=vmem, size = 0x2000, scoped, tag = 'output window, operand 2']
    %13 = vsyncpa [#allocation3], 0
    %s14 = scalar_lea.sflag [#allocation3], 1
    %15 = vsyncpa %s14, 0
    %16 = vsyncpa [#allocation6], 0
    %s17 = scalar_lea.sflag [#allocation6], 1
    %18 = vsyncpa %s17, 0
    %19 = vsyncpa [#allocation4], 0
    %s20 = scalar_lea.sflag [#allocation4], 1
    %21 = vsyncpa %s20, 0
    %22 = vsyncpa [#allocation9], 0
    %s23 = scalar_lea.sflag [#allocation9], 1
    %24 = vsyncpa %s23, 0
    loop: start=0, step=1, limit=4
    $region2: #{gpt2_kvcache_forward.3} parent=1 // loop_pre_header
      _
    $region3: #{gpt2_kvcache_forward.3} parent=1 // loop_header
      %s26 = sphi 0, %s30
      %p27 = scmp.ge.s32.totalorder %s26, 4
      %s36 = sphi 0, %s38
      %s39 = sphi 0, %s36
      %s40 = sphi 0, %s39
      %s56 = sphi 0, %s40
      %s62 = sphi 0, %s64
      %s65 = sphi 0, %s62
      %s66 = sphi 0, %s65
      %s82 = sphi 0, %s66
      %s88 = sphi 0, %s90
      %s91 = sphi 0, %s88
      %s92 = sphi 0, %s91
      %s108 = sphi 0, %s92
      %s112 = sphi 0, %s112
      %s114 = sphi 0, %s112
      %s115 = sphi 0, %s114
      %s129 = sphi 0, %s115
      %s133 = sphi 0, %s133
      %s135 = sphi 0, %s133
      %s136 = sphi 0, %s135
      %s150 = sphi 0, %s136
      %s156 = sphi 0, %s158
      %s159 = sphi 0, %s156
      %s160 = sphi 0, %s159
      %s176 = sphi 0, %s160
      %s182 = sphi 0, %s184
      %s185 = sphi 0, %s182
      %s186 = sphi 0, %s185
      %s202 = sphi 0, %s186
      %s208 = sphi 0, %s210
      %s211 = sphi 0, %s208
      %s212 = sphi 0, %s211
      %s228 = sphi 0, %s212
    $region4: #{gpt2_kvcache_forward.3} parent=1 // loop_header_branch
      %29 = sbr.rel (%p27) target = $region8
    $region5: #{gpt2_kvcache_forward.3} parent=1 // loop_body
      %s31 = ssub.s32 %s26, 1
      %s32 = ssub.s32 %s26, 2
      %s33 = sadd.s32 %s26, 1
      %s34 = ssub.s32 %s26, %s33
      %p35 = scmp.eq.s32.totalorder %s34, 0
      %s37 = sadd.s32 %s36, 1
      %s38 = scalar_select %p35, %s36, %s37
      %p41 = pneg %p35
      %p42 = scmp.eq.s32.totalorder %s26, 1
      %p43 = por %p41, %p42
      %p44 = scmp.ne.s32.totalorder %s36, %s39
      %p45 = scmp.eq.s32.totalorder %s26, 0
      %p46 = por %p44, %p45
      %p47 = scmp.ne.s32.totalorder %s36, %s39
      %p48 = scmp.eq.s32.totalorder %s31, 1
      %p49 = por %p47, %p48
      %p50 = scmp.ne.s32.totalorder %s39, %s40
      %p51 = scmp.eq.s32.totalorder %s31, 0
      %p52 = por %p50, %p51
      %p53 = scmp.ne.s32.totalorder %s39, %s40
      %p54 = scmp.eq.s32.totalorder %s32, 1
      %p55 = por %p53, %p54
      %p57 = scmp.ne.s32.totalorder %s40, %s56
      %p58 = scmp.eq.s32.totalorder %s32, 0
      %p59 = por %p57, %p58
      %s60 = ssub.s32 %s26, %s33
      %p61 = scmp.eq.s32.totalorder %s60, 0
      %s63 = sadd.s32 %s62, 1
      %s64 = scalar_select %p61, %s62, %s63
      %p67 = pneg %p61
      %p68 = scmp.eq.s32.totalorder %s26, 1
      %p69 = por %p67, %p68
      %p70 = scmp.ne.s32.totalorder %s62, %s65
      %p71 = scmp.eq.s32.totalorder %s26, 0
      %p72 = por %p70, %p71
      %p73 = scmp.ne.s32.totalorder %s62, %s65
      %p74 = scmp.eq.s32.totalorder %s31, 1
      %p75 = por %p73, %p74
      %p76 = scmp.ne.s32.totalorder %s65, %s66
      %p77 = scmp.eq.s32.totalorder %s31, 0
      %p78 = por %p76, %p77
      %p79 = scmp.ne.s32.totalorder %s65, %s66
      %p80 = scmp.eq.s32.totalorder %s32, 1
      %p81 = por %p79, %p80
      %p83 = scmp.ne.s32.totalorder %s66, %s82
      %p84 = scmp.eq.s32.totalorder %s32, 0
      %p85 = por %p83, %p84
      %s86 = ssub.s32 %s26, %s33
      %p87 = scmp.eq.s32.totalorder %s86, 0
      %s89 = sadd.s32 %s88, 1
      %s90 = scalar_select %p87, %s88, %s89
      %p93 = pneg %p87
      %p94 = scmp.eq.s32.totalorder %s26, 1
      %p95 = por %p93, %p94
      %p96 = scmp.ne.s32.totalorder %s88, %s91
      %p97 = scmp.eq.s32.totalorder %s26, 0
      %p98 = por %p96, %p97
      %p99 = scmp.ne.s32.totalorder %s88, %s91
      %p100 = scmp.eq.s32.totalorder %s31, 1
      %p101 = por %p99, %p100
      %p102 = scmp.ne.s32.totalorder %s91, %s92
      %p103 = scmp.eq.s32.totalorder %s31, 0
      %p104 = por %p102, %p103
      %p105 = scmp.ne.s32.totalorder %s91, %s92
      %p106 = scmp.eq.s32.totalorder %s32, 1
      %p107 = por %p105, %p106
      %p109 = scmp.ne.s32.totalorder %s92, %s108
      %p110 = scmp.eq.s32.totalorder %s32, 0
      %p111 = por %p109, %p110
      %s113 = sadd.s32 %s112, 1
      %p116 = scmp.eq.s32.totalorder %s26, 1
      %p117 = scmp.ne.s32.totalorder %s112, %s114
      %p118 = scmp.eq.s32.totalorder %s26, 0
      %p119 = por %p117, %p118
      %p120 = scmp.ne.s32.totalorder %s112, %s114
      %p121 = scmp.eq.s32.totalorder %s31, 1
      %p122 = por %p120, %p121
      %p123 = scmp.ne.s32.totalorder %s114, %s115
      %p124 = scmp.eq.s32.totalorder %s31, 0
      %p125 = por %p123, %p124
      %p126 = scmp.ne.s32.totalorder %s114, %s115
      %p127 = scmp.eq.s32.totalorder %s32, 1
      %p128 = por %p126, %p127
      %p130 = scmp.ne.s32.totalorder %s115, %s129
      %p131 = scmp.eq.s32.totalorder %s32, 0
      %p132 = por %p130, %p131
      %s134 = sadd.s32 %s133, 1
      %p137 = scmp.eq.s32.totalorder %s26, 1
      %p138 = scmp.ne.s32.totalorder %s133, %s135
      %p139 = scmp.eq.s32.totalorder %s26, 0
      %p140 = por %p138, %p139
      %p141 = scmp.ne.s32.totalorder %s133, %s135
      %p142 = scmp.eq.s32.totalorder %s31, 1
      %p143 = por %p141, %p142
      %p144 = scmp.ne.s32.totalorder %s135, %s136
      %p145 = scmp.eq.s32.totalorder %s31, 0
      %p146 = por %p144, %p145
      %p147 = scmp.ne.s32.totalorder %s135, %s136
      %p148 = scmp.eq.s32.totalorder %s32, 1
      %p149 = por %p147, %p148
      %p151 = scmp.ne.s32.totalorder %s136, %s150
      %p152 = scmp.eq.s32.totalorder %s32, 0
      %p153 = por %p151, %p152
      %s154 = ssub.s32 %s26, %s33
      %p155 = scmp.eq.s32.totalorder %s154, 0
      %s157 = sadd.s32 %s156, 1
      %s158 = scalar_select %p155, %s156, %s157
      %p161 = pneg %p155
      %p162 = scmp.eq.s32.totalorder %s26, 1
      %p163 = por %p161, %p162
      %p164 = scmp.ne.s32.totalorder %s156, %s159
      %p165 = scmp.eq.s32.totalorder %s26, 0
      %p166 = por %p164, %p165
      %p167 = scmp.ne.s32.totalorder %s156, %s159
      %p168 = scmp.eq.s32.totalorder %s31, 1
      %p169 = por %p167, %p168
      %p170 = scmp.ne.s32.totalorder %s159, %s160
      %p171 = scmp.eq.s32.totalorder %s31, 0
      %p172 = por %p170, %p171
      %p173 = scmp.ne.s32.totalorder %s159, %s160
      %p174 = scmp.eq.s32.totalorder %s32, 1
      %p175 = por %p173, %p174
      %p177 = scmp.ne.s32.totalorder %s160, %s176
      %p178 = scmp.eq.s32.totalorder %s32, 0
      %p179 = por %p177, %p178
      %s180 = ssub.s32 %s26, %s33
      %p181 = scmp.eq.s32.totalorder %s180, 0
      %s183 = sadd.s32 %s182, 1
      %s184 = scalar_select %p181, %s182, %s183
      %p187 = pneg %p181
      %p188 = scmp.eq.s32.totalorder %s26, 1
      %p189 = por %p187, %p188
      %p190 = scmp.ne.s32.totalorder %s182, %s185
      %p191 = scmp.eq.s32.totalorder %s26, 0
      %p192 = por %p190, %p191
      %p193 = scmp.ne.s32.totalorder %s182, %s185
      %p194 = scmp.eq.s32.totalorder %s31, 1
      %p195 = por %p193, %p194
      %p196 = scmp.ne.s32.totalorder %s185, %s186
      %p197 = scmp.eq.s32.totalorder %s31, 0
      %p198 = por %p196, %p197
      %p199 = scmp.ne.s32.totalorder %s185, %s186
      %p200 = scmp.eq.s32.totalorder %s32, 1
      %p201 = por %p199, %p200
      %p203 = scmp.ne.s32.totalorder %s186, %s202
      %p204 = scmp.eq.s32.totalorder %s32, 0
      %p205 = por %p203, %p204
      %s206 = ssub.s32 %s26, %s33
      %p207 = scmp.eq.s32.totalorder %s206, 0
      %s209 = sadd.s32 %s208, 1
      %s210 = scalar_select %p207, %s208, %s209
      %p213 = pneg %p207
      %p214 = scmp.eq.s32.totalorder %s26, 1
      %p215 = por %p213, %p214
      %p216 = scmp.ne.s32.totalorder %s208, %s211
      %p217 = scmp.eq.s32.totalorder %s26, 0
      %p218 = por %p216, %p217
      %p219 = scmp.ne.s32.totalorder %s208, %s211
      %p220 = scmp.eq.s32.totalorder %s31, 1
      %p221 = por %p219, %p220
      %p222 = scmp.ne.s32.totalorder %s211, %s212
      %p223 = scmp.eq.s32.totalorder %s31, 0
      %p224 = por %p222, %p223
      %p225 = scmp.ne.s32.totalorder %s211, %s212
      %p226 = scmp.eq.s32.totalorder %s32, 1
      %p227 = por %p225, %p226
      %p229 = scmp.ne.s32.totalorder %s212, %s228
      %p230 = scmp.eq.s32.totalorder %s32, 0
      %p231 = por %p229, %p230
      %p232 = scmp.le.s32.totalorder 1, %s26
      %p233 = scmp.lt.s32.totalorder %s26, 3
      %p234 = pnand %p232, %p233
      %p235 = pneg %p234
      // Predicated region
      $region9: #{gpt2_kvcache_forward.3} parent=5 // pred_check
        _
      $region10: #{gpt2_kvcache_forward.3} parent=5 // pred_check_branch
        %237 = sbr.rel (%p234) target = $region12
      $region11: #{gpt2_kvcache_forward.3} parent=5 // pred_region
        %s238 = ssub.s32 %s26, 1
        // Predicated region
        $region13: #{gpt2_kvcache_forward.3} parent=11 // pred_check
          %p239 = pneg %p125
        $region14: #{gpt2_kvcache_forward.3} parent=11 // pred_check_branch
          %241 = sbr.rel (%p239) target = $region16
        $region15: #{gpt2_kvcache_forward.3} parent=11 // pred_region
          _
        $region16: #{gpt2_kvcache_forward.3} parent=11 // pred_fallthru
          _
        // Predicated region
        $region17: #{gpt2_kvcache_forward.3} parent=11 // pred_check
          %p242 = pneg %p146
        $region18: #{gpt2_kvcache_forward.3} parent=11 // pred_check_branch
          %244 = sbr.rel (%p242) target = $region20
        $region19: #{gpt2_kvcache_forward.3} parent=11 // pred_region
          _
        $region20: #{gpt2_kvcache_forward.3} parent=11 // pred_fallthru
          _
      $region12: #{gpt2_kvcache_forward.3} parent=5 // pred_fallthru
        _
      %p245 = scmp.lt.s32.totalorder %s26, 2
      // Predicated region
      $region21: #{gpt2_kvcache_forward.3} parent=5 // pred_check
        %p246 = pneg %p245
      $region22: #{gpt2_kvcache_forward.3} parent=5 // pred_check_branch
        %248 = sbr.rel (%p246) target = $region24
      $region23: #{gpt2_kvcache_forward.3} parent=5 // pred_region
        // Predicated region
        $region25: #{gpt2_kvcache_forward.3} parent=23 // pred_check
          %p249 = pneg %p46
        $region26: #{gpt2_kvcache_forward.3} parent=23 // pred_check_branch
          %251 = sbr.rel (%p249) target = $region28
        $region27: #{gpt2_kvcache_forward.3} parent=23 // pred_region
          %p252 = scmp.lt.s32.totalorder %s26, 1
          %s253 = scalar_select %p252, %s26, 1
          %s254 = smul.addr %s253, 6
          %s255 = smul.addr %s254, 4
          %s256 = scalar_lea.vmem %s0, %s255
        $region28: #{gpt2_kvcache_forward.3} parent=23 // pred_fallthru
          _
        // Predicated region
        $region29: #{gpt2_kvcache_forward.3} parent=23 // pred_check
          %p257 = pneg %p72
        $region30: #{gpt2_kvcache_forward.3} parent=23 // pred_check_branch
          %259 = sbr.rel (%p257) target = $region32
        $region31: #{gpt2_kvcache_forward.3} parent=23 // pred_region
          %s260 = sand.u32 %s62, 1
          %s261 = scalar_lea.sflag [#allocation3], %s260
          %s262 = sand.u32 %s62, 1
          %s263 = smul.addr %s262, 8
          %s264 = scalar_lea.vmem [#allocation2], %s263
          %266 = vsyncadd %s261, 0
          %s267 = smul.addr %s26, 8
          %s268 = smul.addr %s267, 4
          %s269 = scalar_lea.hbm %s1, %s268
          %s270 = sshll.u32 %s269, 4
          %s271 = int_to_ptr.hbm [resolvable:$true] %s270
          %s272 = sshll.u32 %s264, 4
          %s273 = int_to_ptr.vmem [resolvable:$true] %s272
          %278 = dma.hbm_to_vmem [thread:$0]  %s271, 128, %s273, %s261, 64, 64, 4
        $region32: #{gpt2_kvcache_forward.3} parent=23 // pred_fallthru
          _
        // Predicated region
        $region33: #{gpt2_kvcache_forward.3} parent=23 // pred_check
          %p279 = pneg %p98
        $region34: #{gpt2_kvcache_forward.3} parent=23 // pred_check_branch
          %281 = sbr.rel (%p279) target = $region36
        $region35: #{gpt2_kvcache_forward.3} parent=23 // pred_region
          %s282 = sand.u32 %s88, 1
          %s283 = scalar_lea.sflag [#allocation6], %s282
          %s284 = sand.u32 %s88, 1
          %s285 = smul.addr %s284, 8
          %s286 = scalar_lea.vmem [#allocation5], %s285
          %288 = vsyncadd %s283, 0
          %s289 = smul.addr %s26, 8
          %s290 = smul.addr %s289, 4
          %s291 = scalar_lea.hbm %s2, %s290
          %s292 = sshll.u32 %s291, 4
          %s293 = int_to_ptr.hbm [resolvable:$true] %s292
          %s294 = sshll.u32 %s286, 4
          %s295 = int_to_ptr.vmem [resolvable:$true] %s294
          %300 = dma.hbm_to_vmem [thread:$0]  %s293, 128, %s295, %s283, 64, 64, 4
        $region36: #{gpt2_kvcache_forward.3} parent=23 // pred_fallthru
          _
      $region24: #{gpt2_kvcache_forward.3} parent=5 // pred_fallthru
        _
      %p301 = scmp.le.s32.totalorder 1, %s26
      %p302 = scmp.lt.s32.totalorder %s26, 3
      %p303 = pnand %p301, %p302
      %p304 = pneg %p303
      // Predicated region
      $region37: #{gpt2_kvcache_forward.3} parent=5 // pred_check
        _
      $region38: #{gpt2_kvcache_forward.3} parent=5 // pred_check_branch
        %306 = sbr.rel (%p303) target = $region40
      $region39: #{gpt2_kvcache_forward.3} parent=5 // pred_region
        %s307 = ssub.s32 %s26, 1
        %s308 = sand.u32 %s65, 1
        %s309 = scalar_lea.sflag [#allocation3], %s308
        %s310 = sand.u32 %s65, 1
        %s311 = smul.addr %s310, 8
        %s312 = scalar_lea.vmem [#allocation2], %s311
        // Predicated region
        $region41: #{gpt2_kvcache_forward.3} parent=39 // pred_check
          %p313 = pneg %p78
        $region42: #{gpt2_kvcache_forward.3} parent=39 // pred_check_branch
          %315 = sbr.rel (%p313) target = $region44
        $region43: #{gpt2_kvcache_forward.3} parent=39 // pred_region
          %317 = dma.done %s309, 128
        $region44: #{gpt2_kvcache_forward.3} parent=39 // pred_fallthru
          _
        %s318 = sand.u32 %s91, 1
        %s319 = scalar_lea.sflag [#allocation6], %s318
        %s320 = sand.u32 %s91, 1
        %s321 = smul.addr %s320, 8
        %s322 = scalar_lea.vmem [#allocation5], %s321
        // Predicated region
        $region45: #{gpt2_kvcache_forward.3} parent=39 // pred_check
          %p323 = pneg %p104
        $region46: #{gpt2_kvcache_forward.3} parent=39 // pred_check_branch
          %325 = sbr.rel (%p323) target = $region48
        $region47: #{gpt2_kvcache_forward.3} parent=39 // pred_region
          %327 = dma.done %s319, 128
        $region48: #{gpt2_kvcache_forward.3} parent=39 // pred_fallthru
          _
        %p328 = scmp.lt.s32.totalorder %s31, 1
        %s329 = scalar_select %p328, %s31, 1
        %s330 = smul.addr %s329, 6
        %s331 = smul.addr %s330, 4
        %s332 = scalar_lea.vmem %s0, %s331
        %p333 = pneg %p52
        %p334 = pneg %p49
        %s335 = sand.u32 %s65, 1
        %s336 = scalar_lea.sflag [#allocation3], %s335
        %s337 = sand.u32 %s65, 1
        %s338 = smul.addr %s337, 8
        %s339 = scalar_lea.vmem [#allocation2], %s338
        %p340 = pneg %p78
        %p341 = pneg %p75
        %s342 = sand.u32 %s91, 1
        %s343 = scalar_lea.sflag [#allocation6], %s342
        %s344 = sand.u32 %s91, 1
        %s345 = smul.addr %s344, 8
        %s346 = scalar_lea.vmem [#allocation5], %s345
        %p347 = pneg %p104
        %p348 = pneg %p101
        %p349 = pneg %p125
        %p350 = pneg %p122
        %p351 = pneg %p146
        %p352 = pneg %p143
        %p353 = pneg %p172
        %p354 = pneg %p169
        %s355 = sand.u32 %s159, 1
        %s356 = scalar_lea.sflag [#allocation4], %s355
        %s357 = sand.u32 %s159, 1
        %s358 = smul.addr %s357, 16
        %s359 = scalar_lea.vmem [#allocation7], %s358
        %p360 = pneg %p198
        %p361 = pneg %p195
        %s362 = sand.u32 %s31, 1
        %s363 = scalar_lea.sflag [#allocation9], %s362
        %s364 = sand.u32 %s185, 1
        %s365 = smul.addr %s364, 8
        %s366 = scalar_lea.vmem [#allocation8], %s365
        %p367 = pneg %p224
        %p368 = pneg %p221
        %s369 = sand.u32 %s31, 1
        %s370 = scalar_lea.sflag [#allocation9], %s369
        %s371 = sand.u32 %s211, 1
        %s372 = smul.addr %s371, 8
        %s373 = scalar_lea.vmem [#allocation10], %s372
        %p374 = scmp.lt.s32.totalorder %s31, 1
        %s375 = scalar_select %p374, %s31, 1
        %s376 = smul.addr %s375, 6
        %s377 = smul.addr %s376, 4
        %s378 = scalar_lea.vmem %s0, %s377
        %v380 = vld [vmem:[%s378] sm:$0xff]
        %v381 = vld [vmem:[%s378 + $0x8] sm:$0xf]
        %v382 = vld [vmem:[%s378 + $0xc] sm:$0xff]
        %v383 = vld [vmem:[%s378 + $0x14] sm:$0xf]
        %v386 = vrot.slane %v380, 4
        %v387 = vrot.slane %v382, 4
        %390 = vst [vmem:[%s366] sm:$0xf] %v386
        %391 = vst [vmem:[%s366 + $0x4] sm:$0xf] %v387
        %392 = vst [vmem:[%s373] sm:$0xf] %v381
        %393 = vst [vmem:[%s373 + $0x4] sm:$0xf] %v383
        %v394 = vunpack.c.l.b16 %v380
        %v395 = vunpack.c.l.b16 %v382
        %v396 = vpack.c.b16 %v395, %v394
        %v398 = vunpack.c.h.b16 %v380
        %v399 = vunpack.c.h.b16 %v382
        %v400 = vpack.c.b16 %v399, %v398
        %402 = vmatpush.bf16.xpose.msra.mxu0 0
        %403 = vmatpush.bf16.xpose.msra.mxu0 0
        %404 = vmatpush.bf16.xpose.msra.mxu0 0
        %405 = vmatpush.bf16.xpose.msra.mxu0 0
        %406 = vmatpush.bf16.xpose.msra.mxu0 0
        %407 = vmatpush.bf16.xpose.msra.mxu0 0
        %408 = vmatpush.bf16.xpose.msra.mxu0 0
        %409 = vmatpush.bf16.xpose.msra.mxu0 %v400
        %410 = vmatmul.bf16.gmra.mxu0 %v396
        %v411 = vpop.f32.mrf.mxu0
        %v412 = vadd.f32 0.0, %v411
        %v413 = vpop.f32.mrf.mxu0
        %v414 = vadd.f32 0.0, %v413
        %415 = vdwg.mxu0
        %v416 = vlaneseq
        %v417 = vshrl.u32 %v416, 7
        %v418 = vadd.s32 %v417, 8
        %v419 = vlaneseq
        %v420 = vand.u32 %v419, 127
        %vm421 = vcmp.le.s32.totalorder %v420, %v417
        %vm422 = vcmp.le.s32.totalorder %v420, %v418
        %v423 = vsel %vm421, %v412, -1e+30
        %v424 = vsel %vm422, %v414, -1e+30
        %v425 = vld [vmem:[%s312] sm:$0xf]
        %v426 = vld [vmem:[%s312 + $0x4] sm:$0xf]
        %v429 = vunpack.c.l.b16 %v425
        %v430 = vunpack.c.l.b16 %v426
        %v431 = vpack.c.b16 %v430, %v429
        %433 = vmatpush.bf16.xpose.msra.mxu0 0
        %434 = vmatpush.bf16.xpose.msra.mxu0 0
        %435 = vmatpush.bf16.xpose.msra.mxu0 0
        %436 = vmatpush.bf16.xpose.msra.mxu0 0
        %437 = vmatpush.bf16.xpose.msra.mxu0 0
        %438 = vmatpush.bf16.xpose.msra.mxu0 0
        %439 = vmatpush.bf16.xpose.msra.mxu0 0
        %440 = vmatpush.bf16.xpose.msra.mxu0 %v431
        %441 = vmatmul.bf16.gmra.mxu0 %v396
        %v442 = vpop.f32.mrf.mxu0
        %v443 = vadd.f32 0.0, %v442
        %v444 = vpop.f32.mrf.mxu0
        %v445 = vadd.f32 0.0, %v444
        %446 = vdwg.mxu0
        %vm447 = vcmask 130048
        %v448 = vsel %vm447, %v443, -inf
        %449 = vmax.xlane.f32.xlu0 %v448
        %v450 = vpop.xlane.xlu0 %449
        %v451 = vsel %vm447, %v445, -inf
        %452 = vmax.xlane.f32.xlu0 %v451
        %v453 = vpop.xlane.xlu0 %452
        %v454 = vsel %vm447, %v423, -inf
        %455 = vmax.xlane.f32.xlu0 %v454
        %v456 = vpop.xlane.xlu0 %455
        %v457 = vsel %vm447, %v424, -inf
        %458 = vmax.xlane.f32.xlu0 %v457
        %v459 = vpop.xlane.xlu0 %458
        %v460 = vmax.f32 %v450, %v456
        %v461 = vmax.f32 %v453, %v459
        %v462 = vsub.f32 %v443, %v460
        %v463 = vsub.f32 %v445, %v461
        %v464 = vmul.f32 %v462, 1.442695
        %v465 = vpow.pop %v464
        %v466 = vmul.f32 %v463, 1.442695
        %v467 = vpow.pop %v466
        %v468 = vsub.f32 %v423, %v460
        %v469 = vsub.f32 %v424, %v461
        %v470 = vmul.f32 %v468, 1.442695
        %v471 = vpow.pop %v470
        %v472 = vmul.f32 %v469, 1.442695
        %v473 = vpow.pop %v472
        %v474 = vsel %vm447, %v465, 0.0
        %475 = vadd.xlane.f32.xlu0 %v474
        %v476 = vpop.xlane.xlu0 %475
        %v477 = vsel %vm447, %v467, 0.0
        %478 = vadd.xlane.f32.xlu0 %v477
        %v479 = vpop.xlane.xlu0 %478
        %v480 = vsel %vm447, %v471, 0.0
        %481 = vadd.xlane.f32.xlu0 %v480
        %v482 = vpop.xlane.xlu0 %481
        %v483 = vsel %vm447, %v473, 0.0
        %484 = vadd.xlane.f32.xlu0 %v483
        %v485 = vpop.xlane.xlu0 %484
        %v486 = vadd.f32 %v476, %v482
        %v487 = vadd.f32 %v479, %v485
        %v488 = vpack.c.bf16 %v467, %v465
        %v489 = vld [vmem:[%s322] sm:$0xf]
        %v490 = vld [vmem:[%s322 + $0x4] sm:$0xf]
        %v491 = vpack.c.bf16 %v473, %v471
        %v494 = vunpack.c.l.b16 %v381
        %v495 = vunpack.c.l.b16 %v383
        %v496 = vpack.c.b16 %v495, %v494
        %v499 = vsel %vm447, %v491, 0
        %501 = vmatpush.bf16.msra.mxu0 0
        %502 = vmatpush.bf16.msra.mxu0 0
        %503 = vmatpush.bf16.msra.mxu0 0
        %504 = vmatpush.bf16.msra.mxu0 0
        %505 = vmatpush.bf16.msra.mxu0 0
        %506 = vmatpush.bf16.msra.mxu0 0
        %507 = vmatpush.bf16.msra.mxu0 0
        %508 = vmatpush.bf16.msra.mxu0 %v496
        %509 = vmatmul.bf16.gmra.mxu0 %v499
        %v510 = vpop.f32.mrf.mxu0
        %v511 = vadd.f32 0.0, %v510
        %v512 = vpop.f32.mrf.mxu0
        %v513 = vadd.f32 0.0, %v512
        %514 = vdwg.mxu0
        %v517 = vunpack.c.l.b16 %v489
        %v518 = vunpack.c.l.b16 %v490
        %v519 = vpack.c.b16 %v518, %v517
        %v522 = vsel %vm447, %v488, 0
        %524 = vmatpush.bf16.msra.mxu0 0
        %525 = vmatpush.bf16.msra.mxu0 0
        %526 = vmatpush.bf16.msra.mxu0 0
        %527 = vmatpush.bf16.msra.mxu0 0
        %528 = vmatpush.bf16.msra.mxu0 0
        %529 = vmatpush.bf16.msra.mxu0 0
        %530 = vmatpush.bf16.msra.mxu0 0
        %531 = vmatpush.bf16.msra.mxu0 %v519
        %532 = vmatmul.bf16.gmra.mxu0 %v522
        %v533 = vpop.f32.mrf.mxu0
        %v534 = vadd.f32 %v511, %v533
        %v535 = vpop.f32.mrf.mxu0
        %v536 = vadd.f32 %v513, %v535
        %537 = vdwg.mxu0
        %v538 = vrcp.pop %v486
        %v539 = vrcp.pop %v487
        %v540 = vmul.f32 %v534, %v538
        %v541 = vmul.f32 %v536, %v539
        %v542 = vpack.c.bf16 %v541, %v540
        %v543 = vld [vmem:[%s3] sm:$0xf]
        %v544 = vld [vmem:[%s3 + $0x4] sm:$0xf]
        %v545 = vld [vmem:[%s3 + $0x8] sm:$0xf]
        %v546 = vld [vmem:[%s3 + $0xc] sm:$0xf]
        %v547 = vld [vmem:[%s3 + $0x10] sm:$0xf]
        %v548 = vld [vmem:[%s3 + $0x14] sm:$0xf]
        %v549 = vld [vmem:[%s3 + $0x18] sm:$0xf]
        %v550 = vld [vmem:[%s3 + $0x1c] sm:$0xf]
        %v551 = vld [vmem:[%s3 + $0x20] sm:$0xf]
        %v552 = vld [vmem:[%s3 + $0x24] sm:$0xf]
        %v553 = vld [vmem:[%s3 + $0x28] sm:$0xf]
        %v554 = vld [vmem:[%s3 + $0x2c] sm:$0xf]
        %v555 = vld [vmem:[%s3 + $0x30] sm:$0xf]
        %v556 = vld [vmem:[%s3 + $0x34] sm:$0xf]
        %v557 = vld [vmem:[%s3 + $0x38] sm:$0xf]
        %v558 = vld [vmem:[%s3 + $0x3c] sm:$0xf]
        %v559 = vld [vmem:[%s4] sm:$0x1]
        %v561 = vperm.slane %v559, 0
        %v579 = vunpack.c.l.b16 %v543
        %v580 = vunpack.c.l.b16 %v544
        %v581 = vunpack.c.l.b16 %v545
        %v582 = vunpack.c.l.b16 %v546
        %v583 = vunpack.c.l.b16 %v547
        %v584 = vunpack.c.l.b16 %v548
        %v585 = vunpack.c.l.b16 %v549
        %v586 = vunpack.c.l.b16 %v550
        %v587 = vunpack.c.l.b16 %v551
        %v588 = vunpack.c.l.b16 %v552
        %v589 = vunpack.c.l.b16 %v553
        %v590 = vunpack.c.l.b16 %v554
        %v591 = vunpack.c.l.b16 %v555
        %v592 = vunpack.c.l.b16 %v556
        %v593 = vunpack.c.l.b16 %v557
        %v594 = vunpack.c.l.b16 %v558
        %v595 = vpack.c.b16 %v580, %v579
        %v596 = vpack.c.b16 %v582, %v581
        %v597 = vpack.c.b16 %v584, %v583
        %v598 = vpack.c.b16 %v586, %v585
        %v599 = vpack.c.b16 %v588, %v587
        %v600 = vpack.c.b16 %v590, %v589
        %v601 = vpack.c.b16 %v592, %v591
        %v602 = vpack.c.b16 %v594, %v593
        %611 = vmatpush.bf16.msra.mxu0 %v602
        %612 = vmatpush.bf16.msra.mxu0 %v601
        %613 = vmatpush.bf16.msra.mxu0 %v600
        %614 = vmatpush.bf16.msra.mxu0 %v599
        %615 = vmatpush.bf16.msra.mxu0 %v598
        %616 = vmatpush.bf16.msra.mxu0 %v597
        %617 = vmatpush.bf16.msra.mxu0 %v596
        %618 = vmatpush.bf16.msra.mxu0 %v595
        %619 = vmatmul.bf16.gmra.mxu0 %v542
        %v620 = vpop.f32.mrf.mxu0
        %v621 = vadd.f32 %v561, %v620
        %v622 = vpop.f32.mrf.mxu0
        %v623 = vadd.f32 %v561, %v622
        %624 = vdwg.mxu0
        %625 = vst [vmem:[%s359] sm:$0xff] %v621
        %626 = vst [vmem:[%s359 + $0x8] sm:$0xff] %v623
        %s627 = sand.u32 %s159, 1
        %s628 = scalar_lea.sflag [#allocation4], %s627
        %s629 = sand.u32 %s159, 1
        %s630 = smul.addr %s629, 16
        %s631 = scalar_lea.vmem [#allocation7], %s630
        %s632 = sand.u32 %s31, 1
        %s633 = scalar_lea.sflag [#allocation9], %s632
        %s634 = sand.u32 %s185, 1
        %s635 = smul.addr %s634, 8
        %s636 = scalar_lea.vmem [#allocation8], %s635
        %s637 = sand.u32 %s31, 1
        %s638 = scalar_lea.sflag [#allocation9], %s637
        %s639 = sand.u32 %s211, 1
        %s640 = smul.addr %s639, 8
        %s641 = scalar_lea.vmem [#allocation10], %s640
        // Predicated region
        $region49: #{gpt2_kvcache_forward.3} parent=39 // pred_check
          %p642 = pneg %p169
        $region50: #{gpt2_kvcache_forward.3} parent=39 // pred_check_branch
          %644 = sbr.rel (%p642) target = $region52
        $region51: #{gpt2_kvcache_forward.3} parent=39 // pred_region
          %646 = vsyncadd %s628, 0
          %s647 = smul.addr %s31, 2
          %s648 = smul.addr %s647, 8
          %s649 = scalar_lea.hbm %s5, %s648
          %s650 = sshll.u32 %s631, 4
          %s651 = int_to_ptr.vmem [resolvable:$true] %s650
          %s652 = sshll.u32 %s649, 4
          %s653 = int_to_ptr.hbm [resolvable:$true] %s652
          %658 = dma.vmem_to_hbm [thread:$0]  %s651, 256, %s653, %s628, 128, 128, 8
        $region52: #{gpt2_kvcache_forward.3} parent=39 // pred_fallthru
          _
        // Predicated region
        $region53: #{gpt2_kvcache_forward.3} parent=39 // pred_check
          %p659 = pneg %p195
        $region54: #{gpt2_kvcache_forward.3} parent=39 // pred_check_branch
          %661 = sbr.rel (%p659) target = $region56
        $region55: #{gpt2_kvcache_forward.3} parent=39 // pred_region
          %663 = vsyncadd %s633, 0
          %s664 = smul.addr %s31, 8
          %s665 = sadd.s32 2, %s664
          %s666 = smul.addr %s665, 4
          %s667 = scalar_lea.hbm %s6, %s666
          %s668 = sshll.u32 %s636, 4
          %s669 = int_to_ptr.vmem [resolvable:$true] %s668
          %s670 = sshll.u32 %s667, 4
          %s671 = int_to_ptr.hbm [resolvable:$true] %s670
          %676 = dma.vmem_to_hbm [thread:$0]  %s669, 128, %s671, %s633, 64, 64, 4
        $region56: #{gpt2_kvcache_forward.3} parent=39 // pred_fallthru
          _
        // Predicated region
        $region57: #{gpt2_kvcache_forward.3} parent=39 // pred_check
          %p677 = pneg %p221
        $region58: #{gpt2_kvcache_forward.3} parent=39 // pred_check_branch
          %679 = sbr.rel (%p677) target = $region60
        $region59: #{gpt2_kvcache_forward.3} parent=39 // pred_region
          %681 = vsyncadd %s638, 0
          %s682 = smul.addr %s31, 8
          %s683 = sadd.s32 2, %s682
          %s684 = smul.addr %s683, 4
          %s685 = scalar_lea.hbm %s7, %s684
          %s686 = sshll.u32 %s641, 4
          %s687 = int_to_ptr.vmem [resolvable:$true] %s686
          %s688 = sshll.u32 %s685, 4
          %s689 = int_to_ptr.hbm [resolvable:$true] %s688
          %694 = dma.vmem_to_hbm [thread:$0]  %s687, 128, %s689, %s638, 64, 64, 4
        $region60: #{gpt2_kvcache_forward.3} parent=39 // pred_fallthru
          _
      $region40: #{gpt2_kvcache_forward.3} parent=5 // pred_fallthru
        _
      %p695 = scmp.le.s32.totalorder 2, %s26
      // Predicated region
      $region61: #{gpt2_kvcache_forward.3} parent=5 // pred_check
        %p696 = pneg %p695
      $region62: #{gpt2_kvcache_forward.3} parent=5 // pred_check_branch
        %698 = sbr.rel (%p696) target = $region64
      $region63: #{gpt2_kvcache_forward.3} parent=5 // pred_region
        %s699 = ssub.s32 %s26, 2
        // Predicated region
        $region65: #{gpt2_kvcache_forward.3} parent=63 // pred_check
          %p700 = pneg %p175
        $region66: #{gpt2_kvcache_forward.3} parent=63 // pred_check_branch
          %702 = sbr.rel (%p700) target = $region68
        $region67: #{gpt2_kvcache_forward.3} parent=63 // pred_region
          %s703 = sand.u32 %s160, 1
          %s704 = scalar_lea.sflag [#allocation4], %s703
          %s705 = sand.u32 %s160, 1
          %s706 = smul.addr %s705, 16
          %s707 = scalar_lea.vmem [#allocation7], %s706
          %709 = dma.done %s704, 256
        $region68: #{gpt2_kvcache_forward.3} parent=63 // pred_fallthru
          _
        // Predicated region
        $region69: #{gpt2_kvcache_forward.3} parent=63 // pred_check
          %p710 = pneg %p201
        $region70: #{gpt2_kvcache_forward.3} parent=63 // pred_check_branch
          %712 = sbr.rel (%p710) target = $region72
        $region71: #{gpt2_kvcache_forward.3} parent=63 // pred_region
          %s713 = sand.u32 %s32, 1
          %s714 = scalar_lea.sflag [#allocation9], %s713
          %s715 = sand.u32 %s186, 1
          %s716 = smul.addr %s715, 8
          %s717 = scalar_lea.vmem [#allocation8], %s716
          %719 = dma.done %s714, 128
        $region72: #{gpt2_kvcache_forward.3} parent=63 // pred_fallthru
          _
        // Predicated region
        $region73: #{gpt2_kvcache_forward.3} parent=63 // pred_check
          %p720 = pneg %p227
        $region74: #{gpt2_kvcache_forward.3} parent=63 // pred_check_branch
          %722 = sbr.rel (%p720) target = $region76
        $region75: #{gpt2_kvcache_forward.3} parent=63 // pred_region
          %s723 = sand.u32 %s32, 1
          %s724 = scalar_lea.sflag [#allocation9], %s723
          %s725 = sand.u32 %s212, 1
          %s726 = smul.addr %s725, 8
          %s727 = scalar_lea.vmem [#allocation10], %s726
          %729 = dma.done %s724, 128
        $region76: #{gpt2_kvcache_forward.3} parent=63 // pred_fallthru
          _
      $region64: #{gpt2_kvcache_forward.3} parent=5 // pred_fallthru
        _
    $region6: #{gpt2_kvcache_forward.3} parent=1 // loop_footer
      %s30 = sadd.s32 1, %s26
    $region7: #{gpt2_kvcache_forward.3} parent=1 // loop_footer_branch
      %25 = sbr.rel target = $region3
    $region8: #{gpt2_kvcache_forward.3} parent=1 // loop_exit
      _
    %730 = vsyncpa [#allocation3], 1
    %s731 = scalar_lea.sflag [#allocation3], 1
    %732 = vsyncpa %s731, 1
    %733 = vsyncpa [#allocation6], 1
    %s734 = scalar_lea.sflag [#allocation6], 1
    %735 = vsyncpa %s734, 1
    %736 = vsyncpa [#allocation4], 1
    %s737 = scalar_lea.sflag [#allocation4], 1
    %738 = vsyncpa %s737, 1
    %739 = vsyncpa [#allocation9], 1
    %s740 = scalar_lea.sflag [#allocation9], 1
    %741 = vsyncpa %s740, 1

</llo_original>
